<compile_context>
chip_gen: v6e
topology: v6e:2x2x1
jax: 0.10.0
libtpu: 0.0.40
codegen_flags: <defaults>
</compile_context>

<pallas_src>
import functools

import numpy as np

import jax
import jax.numpy as jnp
from jax.experimental import pallas as pl
from jax.experimental.pallas import tpu as pltpu


def _round_up(x, m):
    return ((x + m - 1) // m) * m


def _pos_emb_kernel(first_ref, inv_ref, out_ref, *, tile_l, half,
                    use_iota, split_halves):
    # first_ref: SMEM (2,) [start, step]  if use_iota
    #            VMEM (tile_l, 1) positions otherwise
    # inv_ref:   VMEM (1, half), constant index map -> resident across steps
    # out_ref:   VMEM (tile_l, demb) or (tile_l, 2, half)
    if use_iota:
        # Rebuild this tile's positions from (start, step): no pos HBM stream.
        row = jax.lax.broadcasted_iota(jnp.int32, (tile_l, 1), 0).astype(jnp.float32)
        base = (pl.program_id(0) * tile_l).astype(jnp.float32)
        pos = first_ref[0] + (row + base) * first_ref[1]           # [tile_l, 1]
    else:
        pos = first_ref[...]                                       # [tile_l, 1]

    sinusoid = pos * inv_ref[...]                                  # [tile_l, half]
    s = jnp.sin(sinusoid).astype(out_ref.dtype)
    c = jnp.cos(sinusoid).astype(out_ref.dtype)

    if split_halves:
        # half % 128 != 0: write both halves at lane offset 0 (unmasked vst),
        # wrapper reshapes (L, 2, half) -> (L, demb) preserving [sin | cos].
        out_ref[:, 0, :] = s
        out_ref[:, 1, :] = c
    else:
        # half is a multiple of 128: both slices are lane-aligned.
        out_ref[:, :half] = s
        out_ref[:, half:] = c


def _as_integer_affine(pos_seq):
    """(start, step) if pos_seq is a concrete, exactly-affine, integer-valued
    sequence (the Transformer-XL case: a descending arange); else None."""
    try:
        p = np.asarray(pos_seq, dtype=np.float64)
    except Exception:
        return None            # traced value: cannot inspect -> general path
    if p.ndim != 1 or p.size == 0 or not np.all(np.isfinite(p)):
        return None
    start = float(p[0])
    step = float(p[1] - p[0]) if p.size > 1 else 0.0
    if start != round(start) or step != round(step):
        return None            # only fast-path when in-kernel f32 math is exact
    if np.max(np.abs(p)) >= 2.0 ** 24:
        return None
    recon = start + np.arange(p.size, dtype=np.float64) * step
    if not np.array_equal(p, recon):
        return None
    return start, step


def _choose_tile(L, demb, out_itemsize, max_tile_l, pos_in_vmem):
    """Row tile that (a) yields >=4 grid steps for mid/large L (pipelined
    writeback + v7x two-TC split), (b) keeps the double-buffered working set
    within this generation's VMEM, (c) is a multiple of 8 sublanes."""
    half = demb // 2
    try:
        vmem_cap = int(pltpu.get_tpu_info().vmem_capacity_bytes)
    except Exception:
        vmem_cap = 64 << 20                      # conservative: v7x per-TC VMEM

    budget = int(vmem_cap * 0.70)
    # Double-buffered per-row bytes: output tile (+ lane-padded pos tile on the
    # general path: a (tile_l, 1) block pads to 128 lanes).
    per_row = 2 * demb * out_itemsize + (2 * 128 * 4 if pos_in_vmem else 0)
    tile_budget = max(8, (budget // per_row) // 8 * 8)

    target_tiles = 4                              # >=2 to pipeline; >=4 so both
    tile = _round_up(max(pl.cdiv(L, target_tiles), 8), 8)   # v7x TCs pipeline
    tile = min(tile, max_tile_l, tile_budget)

    out_tile = tile * demb * out_itemsize
    pos_tile = tile * 128 * 4 if pos_in_vmem else 0
    inv_bytes = 8 * _round_up(half, 128) * 4
    limit = 2 * (out_tile + pos_tile) + 2 * inv_bytes + (4 << 20)
    limit = min(int(limit), int(vmem_cap * 0.9))
    return tile, limit


def positional_embedding(pos_seq, demb, bsz=None, *,
                         out_dtype=jnp.float32, max_tile_l=2048):
    """pos_seq: [L] float. Returns [L, 1, demb] or [L, bsz, demb]."""
    assert demb % 2 == 0, "demb must be even (sin/cos halves)"
    L = int(pos_seq.shape[0])
    half = demb // 2
    out_itemsize = jnp.dtype(out_dtype).itemsize

    # Deterministic buffer, exactly as in PyTorch __init__.
    inv_freq = 1.0 / (10000.0 ** (jnp.arange(0.0, demb, 2.0, dtype=jnp.float32)
                                  / demb))                          # [half]
    inv2d = inv_freq.reshape(1, half)

    affine = _as_integer_affine(pos_seq)
    use_iota = affine is not None
    split_halves = (half % 128) != 0

    tile_l, vmem_limit = _choose_tile(L, demb, out_itemsize, max_tile_l,
                                      pos_in_vmem=not use_iota)
    grid = (pl.cdiv(L, tile_l),)

    inv_spec = pl.BlockSpec((1, half), lambda i: (0, 0))    # constant index ->
                                                            # stays VMEM-resident
    if split_halves:
        out_shape = jax.ShapeDtypeStruct((L, 2, half), out_dtype)
        out_spec = pl.BlockSpec((tile_l, 2, half), lambda i: (i, 0, 0))
    else:
        out_shape = jax.ShapeDtypeStruct((L, demb), out_dtype)
        out_spec = pl.BlockSpec((tile_l, demb), lambda i: (i, 0))

    if use_iota:
        start, step = affine
        first_arg = jnp.array([start, step], dtype=jnp.float32)
        first_spec = pl.BlockSpec(memory_space=pltpu.MemorySpace.SMEM)
    else:
        first_arg = pos_seq.astype(jnp.float32).reshape(L, 1)
        first_spec = pl.BlockSpec((tile_l, 1), lambda i: (i, 0))

    kernel = functools.partial(_pos_emb_kernel, tile_l=tile_l, half=half,
                               use_iota=use_iota, split_halves=split_halves)

    out = pl.pallas_call(
        kernel,
        out_shape=out_shape,
        grid=grid,
        in_specs=[first_spec, inv_spec],
        out_specs=out_spec,
        compiler_params=pltpu.CompilerParams(
            # L axis is embarrassingly parallel; with >=4 tiles v7x's two
            # TensorCores each get pipelined work (no-op on 1-TC v5e/v6e).
            dimension_semantics=("parallel",),
            vmem_limit_bytes=vmem_limit,
        ),
    )(first_arg, inv2d)

    if split_halves:
        out = out.reshape(L, demb)                 # [sin | cos] order preserved

    out = out[:, None, :]                          # [L, 1, demb]
    if bsz is not None:
        # PyTorch .expand() is a view; keep a lazy broadcast (fused under jit)
        # rather than writing a [L, bsz, demb] copy to HBM.
        out = jnp.broadcast_to(out, (L, bsz, demb))
    return out


if __name__ == "__main__":
    # --- small test: arbitrary (non-affine) pos_seq, demb whose half is not a
    #     multiple of 128 -> general input path + (L, 2, half) store layout.
    demb = 32
    seq = 8
    bsz = 2
    key = jax.random.PRNGKey(0)
    pos_seq = jax.random.uniform(key, (seq,), jnp.float32, 0.0, 16.0)

    out = jax.block_until_ready(positional_embedding(pos_seq, demb, bsz=bsz))

    inv_f = 1.0 / (10000.0 ** (jnp.arange(0.0, demb, 2.0, dtype=jnp.float32) / demb))
    sin_inp = jnp.outer(pos_seq, inv_f)
    ref = jnp.concatenate([jnp.sin(sin_inp), jnp.cos(sin_inp)], axis=-1)
    ref = jnp.broadcast_to(ref[:, None, :], (seq, bsz, demb))
    assert out.shape == (seq, bsz, demb)
    assert jnp.allclose(out, ref, atol=1e-5, rtol=1e-5)

    # --- larger test: Transformer-XL style descending arange (SMEM iota fast
    #     path, no pos DMA), lane-aligned demb, multi-tile grid (4 tiles).
    demb_big = 256
    L_big = 4096 + 8
    pos_big = jnp.arange(L_big - 1, -1, -1, dtype=jnp.float32)
    out_big = jax.block_until_ready(positional_embedding(pos_big, demb_big))

    inv_big = 1.0 / (10000.0 ** (jnp.arange(0.0, demb_big, 2.0, dtype=jnp.float32)
                                 / demb_big))
    sin_big = jnp.outer(pos_big, inv_big)
    ref_big = jnp.concatenate([jnp.sin(sin_big), jnp.cos(sin_big)], -1)[:, None, :]
    assert out_big.shape == (L_big, 1, demb_big)
    assert jnp.allclose(out_big, ref_big, atol=5e-5, rtol=1e-5)

    print("KERNEL_OK")
</pallas_src>

<mosaic_0001>
module attributes {stable_mosaic.version = 11 : i64} {
  func.func @_pos_emb_kernel(%arg0: i32, %arg1: memref<8x1xf32, #tpu.memory_space<vmem>>, %arg2: memref<1x16xf32, #tpu.memory_space<vmem>>, %arg3: memref<8x2x16xf32, #tpu.memory_space<vmem>>) attributes {dimension_semantics = [#tpu.dimension_semantics<parallel>], iteration_bounds = array<i64: 1>, scalar_prefetch = 0 : i64, scratch_operands = 0 : i64, tpu.core_type = #tpu.core_type<tc>, window_params = [{transform_indices = @transform_0, window_bounds = array<i64: 8, 1>}, {pipeline_mode = #tpu.pipeline_mode<synchronous>, transform_indices = @transform_1, window_bounds = array<i64: 1, 16>}, {transform_indices = @transform_2, window_bounds = array<i64: 8, 2, 16>}]} {
    %c0 = arith.constant 0 : index
    %c0_0 = arith.constant 0 : index
    %0 = vector.load %arg1[%c0, %c0_0] : memref<8x1xf32, #tpu.memory_space<vmem>>, vector<8x1xf32>
    %c0_1 = arith.constant 0 : index
    %c0_2 = arith.constant 0 : index
    %1 = vector.load %arg2[%c0_1, %c0_2] : memref<1x16xf32, #tpu.memory_space<vmem>>, vector<1x16xf32>
    %2 = vector.broadcast %0 : vector<8x1xf32> to vector<8x16xf32>
    %3 = vector.broadcast %1 : vector<1x16xf32> to vector<8x16xf32>
    %4 = arith.mulf %2, %3 : vector<8x16xf32>
    %5 = math.sin %4 : vector<8x16xf32>
    %6 = math.cos %4 : vector<8x16xf32>
    %c0_3 = arith.constant 0 : index
    %c0_4 = arith.constant 0 : index
    %c0_5 = arith.constant 0 : index
    %7 = vector.load %arg3[%c0_3, %c0_4, %c0_5] : memref<8x2x16xf32, #tpu.memory_space<vmem>>, vector<8x1x16xf32>
    %8 = vector.shape_cast %7 : vector<8x1x16xf32> to vector<8x16xf32>
    %9 = vector.shape_cast %5 : vector<8x16xf32> to vector<8x1x16xf32>
    tpu.vector_store %arg3[%c0_3, %c0_4, %c0_5], %9 {strides = array<i32>} : memref<8x2x16xf32, #tpu.memory_space<vmem>>, vector<8x1x16xf32>,
    %c0_6 = arith.constant 0 : index
    %c1 = arith.constant 1 : index
    %c0_7 = arith.constant 0 : index
    %10 = vector.load %arg3[%c0_6, %c1, %c0_7] : memref<8x2x16xf32, #tpu.memory_space<vmem>>, vector<8x1x16xf32>
    %11 = vector.shape_cast %10 : vector<8x1x16xf32> to vector<8x16xf32>
    %12 = vector.shape_cast %6 : vector<8x16xf32> to vector<8x1x16xf32>
    tpu.vector_store %arg3[%c0_6, %c1, %c0_7], %12 {strides = array<i32>} : memref<8x2x16xf32, #tpu.memory_space<vmem>>, vector<8x1x16xf32>,
    return
  }
  func.func @transform_0(%arg0: i32) -> (i32, i32) {
    %c0_i32 = arith.constant 0 : i32
    %c0_i32_0 = arith.constant 0 : i32
    return %arg0, %c0_i32 : i32, i32
  }
  func.func @transform_1(%arg0: i32) -> (i32, i32) {
    %c0_i32 = arith.constant 0 : i32
    %c0_i32_0 = arith.constant 0 : i32
    %c0_i32_1 = arith.constant 0 : i32
    return %c0_i32, %c0_i32_0 : i32, i32
  }
  func.func @transform_2(%arg0: i32) -> (i32, i32, i32) {
    %c0_i32 = arith.constant 0 : i32
    %c0_i32_0 = arith.constant 0 : i32
    %c0_i32_1 = arith.constant 0 : i32
    return %arg0, %c0_i32, %c0_i32_0 : i32, i32, i32
  }
}

</mosaic_0001>

<llo_original>
// kernel: tpu_custom_call.1
$region0: #{tpu_custom_call.1}
  #allocation0 [shape = 'u32[]', space=smem, size = 0x4, offset = 0x4, fixed_abs, tag = 'smem constant byte address 0x4 - core index']
  #allocation1 [shape = 'u32[144,128]{1,0:T(1,128)}', space=vmem, size = 0x12000, scoped, tag = 'internal scratch']
  %s0 = inlined_call_operand.vmem [shape: f32[8,1], index: 0, kind: input, shape index: {}]
  %s1 = inlined_call_operand.vmem [shape: f32[1,16], index: 1, kind: input, shape index: {}]
  %s2 = inlined_call_operand.hbm [shape: f32[8,2,16], index: 2, kind: output, shape index: {}]
  %s3 = sld [smem:[#allocation0]]
  $region18: #{tpu_custom_call.1} parent=0
    _
  %s5 = ssub.s32 1, %s3
  %s6 = scalar_select 0, %s5, %s3
  $region1: #{tpu_custom_call.1} parent=0
    #allocation2 [shape = 'u8[8192]{0}', space=vmem, size = 0x2000, scoped, tag = 'output window, operand 0, single buffered']
    #allocation3 [shape = 's32[1]{0}', space=sflag, size = 0x4, scoped, tag = 'scoped memory for tpu_custom_call.1']
    %7 = vsyncpa [#allocation3], 0
    // Predicated region
    $region2: #{tpu_custom_call.1} parent=1 // pred_check
      _
    $region3: #{tpu_custom_call.1} parent=1 // pred_check_branch
      %9 = sbr.rel (0) target = $region5
    $region4: #{tpu_custom_call.1} parent=1 // pred_region
      _
    $region5: #{tpu_custom_call.1} parent=1 // pred_fallthru
      _
    // Predicated region
    $region6: #{tpu_custom_call.1} parent=1 // pred_check
      _
    $region7: #{tpu_custom_call.1} parent=1 // pred_check_branch
      %11 = sbr.rel (0) target = $region9
    $region8: #{tpu_custom_call.1} parent=1 // pred_region
      _
    $region9: #{tpu_custom_call.1} parent=1 // pred_fallthru
      _
    %v12 = vld [vmem:[%s0] sm:$0xff]
    %v13 = vld [vmem:[%s1] sm:$0x1]
    %15 = vset.pattern.permute.xlu0 0
    %16 = vperm.xlu0 %15, %v12
    %v17 = vpop.permute.xlu0 %16
    %v20 = vlaneseq
    %v21 = vshrl.u32 %v20, 7
    %v22 = vsub.s32 0, %v21
    %v23 = vrot.slane %v13, %v22
    %v25 = vmul.f32 %v17, %v23
    %v26 = vand.u32 2147483647, %v25
    %vm27 = vcmp.le.f32.partialorder %v26, 0.7853982
    %vm28 = vcmp.lt.s32.totalorder %v25, 0
    %v29 = vand.u32 %v25, 2139095040
    %v30 = vshrl.u32 %v29, 23
    %v31 = vsub.s32 %v30, 127
    %v32 = vand.u32 2147483647, %v25
    %v33 = vand.u32 %v32, 8388607
    %v34 = vor.u32 %v33, 8388608
    %v35 = vsub.s32 0, %v34
    %v36 = vadd.s32 %v31, 1
    %vm37 = vcmp.gt.s32.totalorder %v36, 0
    %v38 = vsel %vm37, %v36, 0
    %v39 = vshrl.u32 %v38, 5
    %v40 = vand.u32 %v38, 31
    %v41 = vsub.s32 32, %v40
    %v42 = vshrl.u32 683565275, %v41
    %v43 = vshll.u32 683565275, %v40
    %v44 = vshrl.u32 2475754826, %v41
    %v45 = vor.u32 %v43, %v44
    %v46 = vshll.u32 2475754826, %v40
    %v47 = vshrl.u32 2131351028, %v41
    %v48 = vor.u32 %v46, %v47
    %v49 = vshll.u32 2131351028, %v40
    %v50 = vshrl.u32 2102212464, %v41
    %v51 = vor.u32 %v49, %v50
    %v52 = vshll.u32 2102212464, %v40
    %v53 = vshrl.u32 920167782, %v41
    %v54 = vor.u32 %v52, %v53
    %v55 = vshll.u32 920167782, %v40
    %v56 = vshrl.u32 1326507024, %v41
    %v57 = vor.u32 %v55, %v56
    %vm58 = vcmp.lt.s32.totalorder %v39, 1
    %vm59 = vcmp.lt.s32.totalorder %v39, 2
    %vm60 = vcmp.lt.s32.totalorder %v39, 3
    %vm61 = vcmp.lt.s32.totalorder %v39, 4
    %v62 = vsel %vm58, %v42, %v45
    %v63 = vsel %vm61, %v51, 2102212464
    %v64 = vsel %vm60, %v48, %v63
    %v65 = vsel %vm59, %v62, %v64
    %v66 = vsel %vm58, %v45, %v48
    %v67 = vsel %vm61, %v54, 920167782
    %v68 = vsel %vm60, %v51, %v67
    %v69 = vsel %vm59, %v66, %v68
    %v70 = vsel %vm58, %v48, %v51
    %v71 = vsel %vm61, %v57, 1326507024
    %v72 = vsel %vm60, %v54, %v71
    %v73 = vsel %vm59, %v70, %v72
    %v74 = vshll.u32 %v34, 8
    %v75 = vmul.u32.u64.compose %v74, %v73
    %v76 = vextract.low.u32 %v75
    %v77 = vextract.high.u32 %v75
    %v78 = vmul.u32.u64.compose %v74, %v69
    %v79 = vextract.low.u32 %v78
    %v80 = vextract.high.u32 %v78
    %v81 = vmul.u32 %v74, %v65
    %v82 = vadd.s32 %v77, %v79
    %vm83 = vc.u32 %v77, %v79
    %v84 = vadd.s32 %v80, 1
    %v85 = vsel %vm83, %v84, %v80
    %v86 = vadd.s32 %v81, %v85
    %v87 = vadd.s32 %v86, 536870912
    %v88 = vshrl.u32 %v87, 30
    %v89 = vshll.u32 %v88, 30
    %v90 = vsub.s32 %v86, %v89
    %vm91 = vcmp.lt.s32.totalorder %v90, 0
    %v92 = vsub.s32 0, %v90
    %v93 = vsel %vm91, %v92, %v90
    %v94 = vclz %v93
    %v95 = vsub.s32 %v94, 2
    %vm96 = vcmp.gt.s32.totalorder 0, %v95
    %v97 = vsel %vm96, 0, %v95
    %v98 = vsub.s32 32, %v97
    %v99 = vshll.u32 %v90, %v97
    %v100 = vshrl.u32 %v82, %v98
    %v101 = vor.u32 %v99, %v100
    %v102 = vsub.s32 4294967266, %v97
    %v103 = vadd.s32 %v102, 127
    %v104 = vshll.u32 %v103, 23
    %v105 = vor.u32 4788187, %v104
    %v106 = vand.u32 2147483647, %v105
    %v108 = vcvt.s32.f32 %v101
    %v109 = vmul.f32 %v108, %v106
    %v110 = vxor.u32 %v109, 2147483648
    %v111 = vsel %vm28, %v110, %v109
    %v112 = vsub.s32 4, %v88
    %v113 = vsel %vm28, %v112, %v88
    %v114 = vsel %vm27, %v25, %v111
    %v115 = vsel %vm27, 0, %v113
    %v116 = vcosq.f32.pop %v114
    %v117 = vsinq.f32.pop %v114
    %vm118 = vweird.f32 %v25
    %v119 = vadd.s32 %v115, 3
    %v120 = vand.u32 %v119, 3
    %vm121 = vcmp.lt.s32.totalorder %v120, 2
    %vm122 = vcmp.eq.s32.totalorder %v120, 0
    %v123 = vxor.u32 %v117, 2147483648
    %v124 = vsel %vm122, %v116, %v123
    %vm125 = vcmp.eq.s32.totalorder %v120, 2
    %v126 = vxor.u32 %v116, 2147483648
    %v127 = vsel %vm125, %v126, %v117
    %v128 = vsel %vm121, %v124, %v127
    %v129 = vsel %vm118, nan, %v128
    %v130 = vand.u32 2147483647, %v25
    %vm131 = vcmp.le.f32.partialorder %v130, 0.7853982
    %vm132 = vcmp.lt.s32.totalorder %v25, 0
    %v133 = vand.u32 %v25, 2139095040
    %v134 = vshrl.u32 %v133, 23
    %v135 = vsub.s32 %v134, 127
    %v136 = vand.u32 2147483647, %v25
    %v137 = vand.u32 %v136, 8388607
    %v138 = vor.u32 %v137, 8388608
    %v139 = vsub.s32 0, %v138
    %v140 = vadd.s32 %v135, 1
    %vm141 = vcmp.gt.s32.totalorder %v140, 0
    %v142 = vsel %vm141, %v140, 0
    %v143 = vshrl.u32 %v142, 5
    %v144 = vand.u32 %v142, 31
    %v145 = vsub.s32 32, %v144
    %v146 = vshrl.u32 683565275, %v145
    %v147 = vshll.u32 683565275, %v144
    %v148 = vshrl.u32 2475754826, %v145
    %v149 = vor.u32 %v147, %v148
    %v150 = vshll.u32 2475754826, %v144
    %v151 = vshrl.u32 2131351028, %v145
    %v152 = vor.u32 %v150, %v151
    %v153 = vshll.u32 2131351028, %v144
    %v154 = vshrl.u32 2102212464, %v145
    %v155 = vor.u32 %v153, %v154
    %v156 = vshll.u32 2102212464, %v144
    %v157 = vshrl.u32 920167782, %v145
    %v158 = vor.u32 %v156, %v157
    %v159 = vshll.u32 920167782, %v144
    %v160 = vshrl.u32 1326507024, %v145
    %v161 = vor.u32 %v159, %v160
    %vm162 = vcmp.lt.s32.totalorder %v143, 1
    %vm163 = vcmp.lt.s32.totalorder %v143, 2
    %vm164 = vcmp.lt.s32.totalorder %v143, 3
    %vm165 = vcmp.lt.s32.totalorder %v143, 4
    %v166 = vsel %vm162, %v146, %v149
    %v167 = vsel %vm165, %v155, 2102212464
    %v168 = vsel %vm164, %v152, %v167
    %v169 = vsel %vm163, %v166, %v168
    %v170 = vsel %vm162, %v149, %v152
    %v171 = vsel %vm165, %v158, 920167782
    %v172 = vsel %vm164, %v155, %v171
    %v173 = vsel %vm163, %v170, %v172
    %v174 = vsel %vm162, %v152, %v155
    %v175 = vsel %vm165, %v161, 1326507024
    %v176 = vsel %vm164, %v158, %v175
    %v177 = vsel %vm163, %v174, %v176
    %v178 = vshll.u32 %v138, 8
    %v179 = vmul.u32.u64.compose %v178, %v177
    %v180 = vextract.low.u32 %v179
    %v181 = vextract.high.u32 %v179
    %v182 = vmul.u32.u64.compose %v178, %v173
    %v183 = vextract.low.u32 %v182
    %v184 = vextract.high.u32 %v182
    %v185 = vmul.u32 %v178, %v169
    %v186 = vadd.s32 %v181, %v183
    %vm187 = vc.u32 %v181, %v183
    %v188 = vadd.s32 %v184, 1
    %v189 = vsel %vm187, %v188, %v184
    %v190 = vadd.s32 %v185, %v189
    %v191 = vadd.s32 %v190, 536870912
    %v192 = vshrl.u32 %v191, 30
    %v193 = vshll.u32 %v192, 30
    %v194 = vsub.s32 %v190, %v193
    %vm195 = vcmp.lt.s32.totalorder %v194, 0
    %v196 = vsub.s32 0, %v194
    %v197 = vsel %vm195, %v196, %v194
    %v198 = vclz %v197
    %v199 = vsub.s32 %v198, 2
    %vm200 = vcmp.gt.s32.totalorder 0, %v199
    %v201 = vsel %vm200, 0, %v199
    %v202 = vsub.s32 32, %v201
    %v203 = vshll.u32 %v194, %v201
    %v204 = vshrl.u32 %v186, %v202
    %v205 = vor.u32 %v203, %v204
    %v206 = vsub.s32 4294967266, %v201
    %v207 = vadd.s32 %v206, 127
    %v208 = vshll.u32 %v207, 23
    %v209 = vor.u32 4788187, %v208
    %v210 = vand.u32 2147483647, %v209
    %v212 = vcvt.s32.f32 %v205
    %v213 = vmul.f32 %v212, %v210
    %v214 = vxor.u32 %v213, 2147483648
    %v215 = vsel %vm132, %v214, %v213
    %v216 = vsub.s32 4, %v192
    %v217 = vsel %vm132, %v216, %v192
    %v218 = vsel %vm131, %v25, %v215
    %v219 = vsel %vm131, 0, %v217
    %v220 = vcosq.f32.pop %v218
    %v221 = vsinq.f32.pop %v218
    %vm222 = vweird.f32 %v25
    %v223 = vand.u32 %v219, 3
    %vm224 = vcmp.lt.s32.totalorder %v223, 2
    %vm225 = vcmp.eq.s32.totalorder %v223, 0
    %v226 = vxor.u32 %v221, 2147483648
    %v227 = vsel %vm225, %v220, %v226
    %vm228 = vcmp.eq.s32.totalorder %v223, 2
    %v229 = vxor.u32 %v220, 2147483648
    %v230 = vsel %vm228, %v229, %v221
    %v231 = vsel %vm224, %v227, %v230
    %v232 = vsel %vm222, nan, %v231
    %v234 = vcombine.high %v129, %v129
    %v236 = vunpack.c.l.s4 1966171168
    %v237 = vunpack.c.0.s8 %v236
    %v238 = vlaneseq
    %v239 = vshrl.u32 %v238, 7
    %v240 = vsub.s32 %v237, %v239
    %v241 = vrot.slane %v129, %v240
    %v243 = vunpack.c.l.s4 1966171168
    %v244 = vunpack.c.0.s8 %v243
    %v245 = vlaneseq
    %v246 = vshrl.u32 %v245, 7
    %v247 = vsub.s32 %v244, %v246
    %v248 = vrot.slane %v234, %v247
    %v249 = vcombine.high %v241, %v241
    %v250 = vcombine.high %v248, %v248
    %v252 = vunpack.c.l.s4 1966171168
    %v253 = vunpack.c.0.s8 %v252
    %v254 = vlaneseq
    %v255 = vshrl.u32 %v254, 7
    %v256 = vsub.s32 %v253, %v255
    %v257 = vrot.slane %v241, %v256
    %v259 = vunpack.c.l.s4 1966171168
    %v260 = vunpack.c.0.s8 %v259
    %v261 = vlaneseq
    %v262 = vshrl.u32 %v261, 7
    %v263 = vsub.s32 %v260, %v262
    %v264 = vrot.slane %v248, %v263
    %v266 = vunpack.c.l.s4 1966171168
    %v267 = vunpack.c.0.s8 %v266
    %v268 = vlaneseq
    %v269 = vshrl.u32 %v268, 7
    %v270 = vsub.s32 %v267, %v269
    %v271 = vrot.slane %v249, %v270
    %v273 = vunpack.c.l.s4 1966171168
    %v274 = vunpack.c.0.s8 %v273
    %v275 = vlaneseq
    %v276 = vshrl.u32 %v275, 7
    %v277 = vsub.s32 %v274, %v276
    %v278 = vrot.slane %v250, %v277
    %v279 = vcombine.high %v257, %v257
    %v280 = vcombine.high %v264, %v264
    %v281 = vcombine.high %v271, %v271
    %v282 = vcombine.high %v278, %v278
    %vm291 = vcmask 122880
    %292 = vst.msk [vmem:[#allocation2] sm:$0x1] %vm291, %v257
    %293 = vst.msk [vmem:[#allocation2 + $0x2] sm:$0x1] %vm291, %v271
    %294 = vst.msk [vmem:[#allocation2 + $0x4] sm:$0x1] %vm291, %v279
    %295 = vst.msk [vmem:[#allocation2 + $0x6] sm:$0x1] %vm291, %v281
    %296 = vst.msk [vmem:[#allocation2 + $0x8] sm:$0x1] %vm291, %v264
    %297 = vst.msk [vmem:[#allocation2 + $0xa] sm:$0x1] %vm291, %v278
    %298 = vst.msk [vmem:[#allocation2 + $0xc] sm:$0x1] %vm291, %v280
    %299 = vst.msk [vmem:[#allocation2 + $0xe] sm:$0x1] %vm291, %v282
    %v301 = vcombine.high %v232, %v232
    %v303 = vunpack.c.l.s4 1966171168
    %v304 = vunpack.c.0.s8 %v303
    %v305 = vlaneseq
    %v306 = vshrl.u32 %v305, 7
    %v307 = vsub.s32 %v304, %v306
    %v308 = vrot.slane %v232, %v307
    %v310 = vunpack.c.l.s4 1966171168
    %v311 = vunpack.c.0.s8 %v310
    %v312 = vlaneseq
    %v313 = vshrl.u32 %v312, 7
    %v314 = vsub.s32 %v311, %v313
    %v315 = vrot.slane %v301, %v314
    %v316 = vcombine.high %v308, %v308
    %v317 = vcombine.high %v315, %v315
    %v319 = vunpack.c.l.s4 1966171168
    %v320 = vunpack.c.0.s8 %v319
    %v321 = vlaneseq
    %v322 = vshrl.u32 %v321, 7
    %v323 = vsub.s32 %v320, %v322
    %v324 = vrot.slane %v308, %v323
    %v326 = vunpack.c.l.s4 1966171168
    %v327 = vunpack.c.0.s8 %v326
    %v328 = vlaneseq
    %v329 = vshrl.u32 %v328, 7
    %v330 = vsub.s32 %v327, %v329
    %v331 = vrot.slane %v315, %v330
    %v333 = vunpack.c.l.s4 1966171168
    %v334 = vunpack.c.0.s8 %v333
    %v335 = vlaneseq
    %v336 = vshrl.u32 %v335, 7
    %v337 = vsub.s32 %v334, %v336
    %v338 = vrot.slane %v316, %v337
    %v340 = vunpack.c.l.s4 1966171168
    %v341 = vunpack.c.0.s8 %v340
    %v342 = vlaneseq
    %v343 = vshrl.u32 %v342, 7
    %v344 = vsub.s32 %v341, %v343
    %v345 = vrot.slane %v317, %v344
    %v346 = vcombine.high %v324, %v324
    %v347 = vcombine.high %v331, %v331
    %v348 = vcombine.high %v338, %v338
    %v349 = vcombine.high %v345, %v345
    %358 = vst.msk [vmem:[#allocation2 + $0x1] sm:$0x1] %vm291, %v324
    %359 = vst.msk [vmem:[#allocation2 + $0x3] sm:$0x1] %vm291, %v338
    %360 = vst.msk [vmem:[#allocation2 + $0x5] sm:$0x1] %vm291, %v346
    %361 = vst.msk [vmem:[#allocation2 + $0x7] sm:$0x1] %vm291, %v348
    %362 = vst.msk [vmem:[#allocation2 + $0x9] sm:$0x1] %vm291, %v331
    %363 = vst.msk [vmem:[#allocation2 + $0xb] sm:$0x1] %vm291, %v345
    %364 = vst.msk [vmem:[#allocation2 + $0xd] sm:$0x1] %vm291, %v347
    %365 = vst.msk [vmem:[#allocation2 + $0xf] sm:$0x1] %vm291, %v349
    // Predicated region
    $region10: #{tpu_custom_call.1} parent=1 // pred_check
      _
    $region11: #{tpu_custom_call.1} parent=1 // pred_check_branch
      %367 = sbr.rel (0) target = $region13
    $region12: #{tpu_custom_call.1} parent=1 // pred_region
      %s369 = ssub.s32 256, 256
      %370 = vsyncadd [#allocation3], %s369
      %s371 = sshll.u32 [#allocation2], 4
      %s372 = int_to_ptr.vmem [resolvable:$true] %s371
      %377 = dma.vmem_to_hbm [thread:$0]  %s372, 256, %s2, [#allocation3], 32, 32, 2
    $region13: #{tpu_custom_call.1} parent=1 // pred_fallthru
      _
    // Predicated region
    $region14: #{tpu_custom_call.1} parent=1 // pred_check
      _
    $region15: #{tpu_custom_call.1} parent=1 // pred_check_branch
      %379 = sbr.rel (0) target = $region17
    $region16: #{tpu_custom_call.1} parent=1 // pred_region
      %380 = dma.done [#allocation3], 256
    $region17: #{tpu_custom_call.1} parent=1 // pred_fallthru
      _
    %381 = vsyncpa [#allocation3], 1

</llo_original>
